<compile_context>
chip_gen: v7x
topology: tpu7x:2x2x1
jax: 0.10.0
libtpu: 0.0.40
codegen_flags: <defaults>
</compile_context>

<pallas_src>
import jax
import jax.numpy as jnp
from jax.experimental import pallas as pl
from jax.experimental.pallas import tpu as pltpu


def _dfamlp_kernel(inv_t_ref, x_ref, w1_ref, b1_ref, w2_ref, b2_ref, mask_ref,
                   logsm_ref, sm_ref, acc_ref):
    # x_ref: (TM, F)   w1: (F, H)  b1: (1, H)  w2: (H, S)  b2: (1, S)
    # mask_ref: (1, S) 0/1 indicator of accepting states
    # inv_t_ref: (1, 1) f32 scalar in SMEM (reciprocal of the temperature)
    inv_t = inv_t_ref[0, 0]

    # ns_predictor: Linear -> ReLU -> Linear (MXU matmuls, f32 accumulate).
    h = jnp.dot(x_ref[...], w1_ref[...], preferred_element_type=jnp.float32)
    h = jnp.maximum(h + b1_ref[...], 0.0)
    logits = jnp.dot(h, w2_ref[...], preferred_element_type=jnp.float32)
    logits = (logits + b2_ref[...]) * inv_t

    # Numerically stable softmax / log_softmax over the state axis.
    m = jnp.max(logits, axis=-1, keepdims=True)
    z = logits - m
    e = jnp.exp(z)
    denom = jnp.sum(e, axis=-1, keepdims=True)
    sm = e / denom
    logsm = z - jnp.log(denom)

    logsm_ref[...] = logsm.astype(logsm_ref.dtype)
    sm_ref[...] = sm.astype(sm_ref.dtype)
    # Probability mass on accepting states, per batch row.
    acc_ref[...] = jnp.sum(sm * mask_ref[...], axis=-1,
                           keepdims=True).astype(acc_ref.dtype)


def dfamlp_forward(log_s0, s0, constraints, params, accepting, *,
                   calibrate=True, eps=1e-3, block_b=256):
    """Pallas implementation of DFAMLP.forward.

    log_s0: (B, S) — unused by the reference forward (kept for interface parity)
    s0:     (B, S) previous state distribution
    constraints: dict {proposition: (B,) float32}
    params: dict with w1 (F,H), b1 (H,), w2 (H,S), b2 (S,), temperature_logit (1,)
    accepting: list[int] of accepting state indices
    returns: (log_softmax (B,S), softmax (B,S), accepted (B,))
    """
    del log_s0  # unused by the reference forward

    w1 = params["w1"].astype(jnp.float32)
    w2 = params["w2"].astype(jnp.float32)
    H = w1.shape[1]
    S = w2.shape[1]
    b1 = params["b1"].reshape(1, H).astype(jnp.float32)
    b2 = params["b2"].reshape(1, S).astype(jnp.float32)

    # Input concat: [s0, constraints in sorted key order].
    keys = sorted(constraints.keys())
    x = jnp.concatenate(
        [s0.astype(jnp.float32)] + [constraints[p].astype(jnp.float32)[:, None]
                                    for p in keys], axis=1)
    B, F = x.shape

    # Temperature (calibrated or fixed at 1.0) — passed as an SMEM scalar.
    if calibrate:
        t = jnp.maximum(params["temperature_logit"].reshape(()), 0.0) + eps
    else:
        t = jnp.float32(1.0)
    inv_t = (1.0 / t).reshape(1, 1).astype(jnp.float32)

    # Accepting-state indicator mask.
    mask = jnp.zeros((1, S), jnp.float32).at[0, jnp.asarray(accepting)].set(1.0)

    # Batch tiling: TM multiple of 8, capped at block_b; pad B up if needed.
    if B <= block_b:
        TM = max(8, -(-B // 8) * 8)
    else:
        TM = block_b
    G = pl.cdiv(B, TM)
    Bp = G * TM
    if Bp != B:
        x = jnp.pad(x, ((0, Bp - B), (0, 0)))

    cost = pl.CostEstimate(
        flops=2 * Bp * F * H + 2 * Bp * H * S,
        transcendentals=Bp * (S + 1),
        bytes_accessed=4 * (Bp * F + F * H + H + H * S + 2 * S
                            + 2 * Bp * S + Bp),
    )

    out_shape = (
        jax.ShapeDtypeStruct((Bp, S), jnp.float32),   # log_softmax
        jax.ShapeDtypeStruct((Bp, S), jnp.float32),   # softmax
        jax.ShapeDtypeStruct((Bp, 1), jnp.float32),   # accepted mass
    )

    grid_spec = pltpu.PrefetchScalarGridSpec(
        num_scalar_prefetch=0,
        grid=(G,),
        in_specs=[
            pl.BlockSpec(memory_space=pltpu.MemorySpace.SMEM),  # inv_t (1,1)
            pl.BlockSpec((TM, F), lambda i: (i, 0)),            # x tile (streamed)
            pl.BlockSpec((F, H), lambda i: (0, 0)),             # w1 (VMEM-resident)
            pl.BlockSpec((1, H), lambda i: (0, 0)),             # b1
            pl.BlockSpec((H, S), lambda i: (0, 0)),             # w2
            pl.BlockSpec((1, S), lambda i: (0, 0)),             # b2
            pl.BlockSpec((1, S), lambda i: (0, 0)),             # accepting mask
        ],
        out_specs=(
            pl.BlockSpec((TM, S), lambda i: (i, 0)),
            pl.BlockSpec((TM, S), lambda i: (i, 0)),
            pl.BlockSpec((TM, 1), lambda i: (i, 0)),
        ),
    )

    logsm, sm, acc = pl.pallas_call(
        _dfamlp_kernel,
        out_shape=out_shape,
        grid_spec=grid_spec,
        compiler_params=pltpu.CompilerParams(
            dimension_semantics=("parallel",),   # disjoint batch tiles -> megacore
        ),
        cost_estimate=cost,
    )(inv_t, x, w1, b1, w2, b2, mask)

    return logsm[:B], sm[:B], acc[:B, 0]


def _reference(log_s0, s0, constraints, params, accepting, calibrate, eps):
    del log_s0
    keys = sorted(constraints.keys())
    x = jnp.concatenate([s0] + [constraints[p][:, None] for p in keys], axis=1)
    h = jnp.maximum(x @ params["w1"] + params["b1"].reshape(1, -1), 0.0)
    ns = h @ params["w2"] + params["b2"].reshape(1, -1)
    if calibrate:
        t = jnp.maximum(params["temperature_logit"].reshape(()), 0.0) + eps
    else:
        t = 1.0
    logits = ns / t
    sm = jax.nn.softmax(logits, axis=1)
    logsm = jax.nn.log_softmax(logits, axis=1)
    accepted = jnp.sum(sm[:, jnp.asarray(accepting)], axis=1)
    return logsm, sm, accepted


if __name__ == "__main__":
    num_states = 5
    propositions = ["p0", "p1", "p2"]
    accepting = [1, 3]
    num_neurons = 32
    B = 8
    eps = 1e-3

    key = jax.random.PRNGKey(0)
    k_s0, k_c, k_w1, k_b1, k_w2, k_b2 = jax.random.split(key, 6)

    s0 = jax.nn.softmax(jax.random.normal(k_s0, (B, num_states), jnp.float32), axis=1)
    log_s0 = jnp.log(s0)
    ckeys = jax.random.split(k_c, len(propositions))
    constraints = {p: jax.nn.sigmoid(jax.random.normal(ck, (B,), jnp.float32))
                   for p, ck in zip(propositions, ckeys)}

    F = num_states + len(propositions)
    params = {
        "w1": 0.5 * jax.random.normal(k_w1, (F, num_neurons), jnp.float32),
        "b1": 0.1 * jax.random.normal(k_b1, (num_neurons,), jnp.float32),
        "w2": 0.5 * jax.random.normal(k_w2, (num_neurons, num_states), jnp.float32),
        "b2": 0.1 * jax.random.normal(k_b2, (num_states,), jnp.float32),
        "temperature_logit": jnp.array([0.75], jnp.float32),
    }

    # calibrate=True path.
    logsm, sm, accepted = dfamlp_forward(log_s0, s0, constraints, params,
                                         accepting, calibrate=True, eps=eps)
    jax.block_until_ready((logsm, sm, accepted))
    r_logsm, r_sm, r_acc = _reference(log_s0, s0, constraints, params,
                                      accepting, True, eps)
    assert logsm.shape == (B, num_states)
    assert sm.shape == (B, num_states)
    assert accepted.shape == (B,)
    assert jnp.allclose(logsm, r_logsm, rtol=1e-3, atol=1e-3)
    assert jnp.allclose(sm, r_sm, rtol=1e-3, atol=1e-3)
    assert jnp.allclose(accepted, r_acc, rtol=1e-3, atol=1e-3)

    # calibrate=False path.
    logsm2, sm2, acc2 = dfamlp_forward(log_s0, s0, constraints, params,
                                       accepting, calibrate=False, eps=eps)
    jax.block_until_ready((logsm2, sm2, acc2))
    r2 = _reference(log_s0, s0, constraints, params, accepting, False, eps)
    assert jnp.allclose(logsm2, r2[0], rtol=1e-3, atol=1e-3)
    assert jnp.allclose(sm2, r2[1], rtol=1e-3, atol=1e-3)
    assert jnp.allclose(acc2, r2[2], rtol=1e-3, atol=1e-3)

    print("KERNEL_OK")
</pallas_src>

<mosaic_0001>
module attributes {stable_mosaic.version = 11 : i64} {
  func.func @_dfamlp_kernel(%arg0: i32, %arg1: memref<1x1xf32, #tpu.memory_space<smem>>, %arg2: memref<8x8xf32, #tpu.memory_space<vmem>>, %arg3: memref<8x32xf32, #tpu.memory_space<vmem>>, %arg4: memref<1x32xf32, #tpu.memory_space<vmem>>, %arg5: memref<32x5xf32, #tpu.memory_space<vmem>>, %arg6: memref<1x5xf32, #tpu.memory_space<vmem>>, %arg7: memref<1x5xf32, #tpu.memory_space<vmem>>, %arg8: memref<8x5xf32, #tpu.memory_space<vmem>>, %arg9: memref<8x5xf32, #tpu.memory_space<vmem>>, %arg10: memref<8x1xf32, #tpu.memory_space<vmem>>) attributes {dimension_semantics = [#tpu.dimension_semantics<parallel>], iteration_bounds = array<i64: 1>, scalar_prefetch = 0 : i64, scratch_operands = 0 : i64, tpu.core_type = #tpu.core_type<tc>, window_params = [{transform_indices = @transform_0, window_bounds = array<i64: 1, 1>}, {transform_indices = @transform_1, window_bounds = array<i64: 8, 8>}, {pipeline_mode = #tpu.pipeline_mode<synchronous>, transform_indices = @transform_2, window_bounds = array<i64: 8, 32>}, {pipeline_mode = #tpu.pipeline_mode<synchronous>, transform_indices = @transform_3, window_bounds = array<i64: 1, 32>}, {pipeline_mode = #tpu.pipeline_mode<synchronous>, transform_indices = @transform_4, window_bounds = array<i64: 32, 5>}, {pipeline_mode = #tpu.pipeline_mode<synchronous>, transform_indices = @transform_5, window_bounds = array<i64: 1, 5>}, {pipeline_mode = #tpu.pipeline_mode<synchronous>, transform_indices = @transform_6, window_bounds = array<i64: 1, 5>}, {transform_indices = @transform_7, window_bounds = array<i64: 8, 5>}, {transform_indices = @transform_8, window_bounds = array<i64: 8, 5>}, {transform_indices = @transform_9, window_bounds = array<i64: 8, 1>}]} {
    %c0 = arith.constant 0 : index
    %c0_0 = arith.constant 0 : index
    %0 = memref.load %arg1[%c0, %c0_0] : memref<1x1xf32, #tpu.memory_space<smem>>
    %c0_1 = arith.constant 0 : index
    %c0_2 = arith.constant 0 : index
    %1 = vector.load %arg2[%c0_1, %c0_2] : memref<8x8xf32, #tpu.memory_space<vmem>>, vector<8x8xf32>
    %c0_3 = arith.constant 0 : index
    %c0_4 = arith.constant 0 : index
    %2 = vector.load %arg3[%c0_3, %c0_4] : memref<8x32xf32, #tpu.memory_space<vmem>>, vector<8x32xf32>
    %cst = arith.constant dense<0.000000e+00> : vector<8x32xf32>
    %3 = tpu.matmul %1, %2, %cst {dimension_numbers = #tpu.dot_dimension_numbers<[1], [0], [0], [1], [0, 0, 1, 1], [], []>} : vector<8x8xf32>, vector<8x32xf32>, vector<8x32xf32> -> vector<8x32xf32>
    %c0_5 = arith.constant 0 : index
    %c0_6 = arith.constant 0 : index
    %4 = vector.load %arg4[%c0_5, %c0_6] : memref<1x32xf32, #tpu.memory_space<vmem>>, vector<1x32xf32>
    %5 = vector.broadcast %4 : vector<1x32xf32> to vector<8x32xf32>
    %6 = arith.addf %3, %5 : vector<8x32xf32>
    %cst_7 = arith.constant 0.000000e+00 : f32
    %7 = vector.broadcast %cst_7 : f32 to vector<8x32xf32>
    %8 = arith.maximumf %6, %7 : vector<8x32xf32>
    %c0_8 = arith.constant 0 : index
    %c0_9 = arith.constant 0 : index
    %9 = vector.load %arg5[%c0_8, %c0_9] : memref<32x5xf32, #tpu.memory_space<vmem>>, vector<32x5xf32>
    %cst_10 = arith.constant dense<0.000000e+00> : vector<8x5xf32>
    %10 = tpu.matmul %8, %9, %cst_10 {dimension_numbers = #tpu.dot_dimension_numbers<[1], [0], [0], [1], [0, 0, 1, 1], [], []>} : vector<8x32xf32>, vector<32x5xf32>, vector<8x5xf32> -> vector<8x5xf32>
    %c0_11 = arith.constant 0 : index
    %c0_12 = arith.constant 0 : index
    %11 = vector.load %arg6[%c0_11, %c0_12] : memref<1x5xf32, #tpu.memory_space<vmem>>, vector<1x5xf32>
    %12 = vector.broadcast %11 : vector<1x5xf32> to vector<8x5xf32>
    %13 = arith.addf %10, %12 : vector<8x5xf32>
    %14 = vector.broadcast %0 : f32 to vector<8x5xf32>
    %15 = arith.mulf %13, %14 : vector<8x5xf32>
    %cst_13 = arith.constant dense<0xFF800000> : vector<8xf32>
    %16 = vector.multi_reduction <maximumf>, %15, %cst_13 [1] : vector<8x5xf32> to vector<8xf32>
    %17 = vector.shape_cast %16 : vector<8xf32> to vector<8x1xf32>
    %18 = vector.broadcast %17 : vector<8x1xf32> to vector<8x5xf32>
    %19 = arith.subf %15, %18 : vector<8x5xf32>
    %20 = math.exp %19 : vector<8x5xf32>
    %cst_14 = arith.constant dense<0.000000e+00> : vector<8xf32>
    %21 = vector.multi_reduction <add>, %20, %cst_14 [1] : vector<8x5xf32> to vector<8xf32>
    %22 = vector.shape_cast %21 : vector<8xf32> to vector<8x1xf32>
    %23 = vector.broadcast %22 : vector<8x1xf32> to vector<8x5xf32>
    %24 = arith.divf %20, %23 : vector<8x5xf32>
    %25 = math.log %22 : vector<8x1xf32>
    %26 = vector.broadcast %25 : vector<8x1xf32> to vector<8x5xf32>
    %27 = arith.subf %19, %26 : vector<8x5xf32>
    %c0_15 = arith.constant 0 : index
    %c0_16 = arith.constant 0 : index
    %28 = vector.load %arg8[%c0_15, %c0_16] : memref<8x5xf32, #tpu.memory_space<vmem>>, vector<8x5xf32>
    tpu.vector_store %arg8[%c0_15, %c0_16], %27 {strides = array<i32>} : memref<8x5xf32, #tpu.memory_space<vmem>>, vector<8x5xf32>,
    %c0_17 = arith.constant 0 : index
    %c0_18 = arith.constant 0 : index
    %29 = vector.load %arg9[%c0_17, %c0_18] : memref<8x5xf32, #tpu.memory_space<vmem>>, vector<8x5xf32>
    tpu.vector_store %arg9[%c0_17, %c0_18], %24 {strides = array<i32>} : memref<8x5xf32, #tpu.memory_space<vmem>>, vector<8x5xf32>,
    %c0_19 = arith.constant 0 : index
    %c0_20 = arith.constant 0 : index
    %30 = vector.load %arg7[%c0_19, %c0_20] : memref<1x5xf32, #tpu.memory_space<vmem>>, vector<1x5xf32>
    %31 = vector.broadcast %30 : vector<1x5xf32> to vector<8x5xf32>
    %32 = arith.mulf %24, %31 : vector<8x5xf32>
    %cst_21 = arith.constant dense<0.000000e+00> : vector<8xf32>
    %33 = vector.multi_reduction <add>, %32, %cst_21 [1] : vector<8x5xf32> to vector<8xf32>
    %34 = vector.shape_cast %33 : vector<8xf32> to vector<8x1xf32>
    %c0_22 = arith.constant 0 : index
    %c0_23 = arith.constant 0 : index
    %35 = vector.load %arg10[%c0_22, %c0_23] : memref<8x1xf32, #tpu.memory_space<vmem>>, vector<8x1xf32>
    tpu.vector_store %arg10[%c0_22, %c0_23], %34 {strides = array<i32>} : memref<8x1xf32, #tpu.memory_space<vmem>>, vector<8x1xf32>,
    return
  }
  func.func @transform_0(%arg0: i32) -> (i32, i32) {
    %c0_i32 = arith.constant 0 : i32
    %c0_i32_0 = arith.constant 0 : i32
    %c0_i32_1 = arith.constant 0 : i32
    return %c0_i32, %c0_i32_0 : i32, i32
  }
  func.func @transform_1(%arg0: i32) -> (i32, i32) {
    %c0_i32 = arith.constant 0 : i32
    %c0_i32_0 = arith.constant 0 : i32
    return %arg0, %c0_i32 : i32, i32
  }
  func.func @transform_2(%arg0: i32) -> (i32, i32) {
    %c0_i32 = arith.constant 0 : i32
    %c0_i32_0 = arith.constant 0 : i32
    %c0_i32_1 = arith.constant 0 : i32
    return %c0_i32, %c0_i32_0 : i32, i32
  }
  func.func @transform_3(%arg0: i32) -> (i32, i32) {
    %c0_i32 = arith.constant 0 : i32
    %c0_i32_0 = arith.constant 0 : i32
    %c0_i32_1 = arith.constant 0 : i32
    return %c0_i32, %c0_i32_0 : i32, i32
  }
  func.func @transform_4(%arg0: i32) -> (i32, i32) {
    %c0_i32 = arith.constant 0 : i32
    %c0_i32_0 = arith.constant 0 : i32
    %c0_i32_1 = arith.constant 0 : i32
    return %c0_i32, %c0_i32_0 : i32, i32
  }
  func.func @transform_5(%arg0: i32) -> (i32, i32) {
    %c0_i32 = arith.constant 0 : i32
    %c0_i32_0 = arith.constant 0 : i32
    %c0_i32_1 = arith.constant 0 : i32
    return %c0_i32, %c0_i32_0 : i32, i32
  }
  func.func @transform_6(%arg0: i32) -> (i32, i32) {
    %c0_i32 = arith.constant 0 : i32
    %c0_i32_0 = arith.constant 0 : i32
    %c0_i32_1 = arith.constant 0 : i32
    return %c0_i32, %c0_i32_0 : i32, i32
  }
  func.func @transform_7(%arg0: i32) -> (i32, i32) {
    %c0_i32 = arith.constant 0 : i32
    %c0_i32_0 = arith.constant 0 : i32
    return %arg0, %c0_i32 : i32, i32
  }
  func.func @transform_8(%arg0: i32) -> (i32, i32) {
    %c0_i32 = arith.constant 0 : i32
    %c0_i32_0 = arith.constant 0 : i32
    return %arg0, %c0_i32 : i32, i32
  }
  func.func @transform_9(%arg0: i32) -> (i32, i32) {
    %c0_i32 = arith.constant 0 : i32
    %c0_i32_0 = arith.constant 0 : i32
    return %arg0, %c0_i32 : i32, i32
  }
}

</mosaic_0001>

<llo_original>
// kernel: tpu_custom_call.1
$region0: #{tpu_custom_call.1}
  #allocation0 [shape = 'u32[]', space=smem, size = 0x4, offset = 0x4, fixed_abs, tag = 'smem constant byte address 0x4 - core index']
  #allocation1 [shape = 'u32[144,128]{1,0:T(1,128)}', space=vmem, size = 0x12000, scoped, tag = 'internal scratch']
  #allocation2 [shape = 'f32[1,1]{1,0:T(1,128)S(6)}', space=smem, size = 0x200, scoped, tag = 'scoped memory for tpu_custom_call.1']
  %s0 = inlined_call_operand.<no memory space> [shape: f32[1,1], index: 0, kind: input, shape index: {}]
  %s1 = inlined_call_operand.vmem [shape: f32[8,8], index: 1, kind: input, shape index: {}]
  %s2 = inlined_call_operand.vmem [shape: f32[8,32], index: 2, kind: input, shape index: {}]
  %s3 = inlined_call_operand.vmem [shape: f32[1,32], index: 3, kind: input, shape index: {}]
  %s4 = inlined_call_operand.vmem [shape: f32[32,5], index: 4, kind: input, shape index: {}]
  %s5 = inlined_call_operand.vmem [shape: f32[1,5], index: 5, kind: input, shape index: {}]
  %s6 = inlined_call_operand.vmem [shape: f32[1,5], index: 6, kind: input, shape index: {}]
  %s7 = inlined_call_operand.hbm [shape: f32[8,5], index: 7, kind: output, shape index: {0}]
  %s8 = inlined_call_operand.hbm [shape: f32[8,5], index: 8, kind: output, shape index: {1}]
  %s9 = inlined_call_operand.vmem [shape: f32[8,1], index: 9, kind: output, shape index: {2}]
  %10 = xla_tuple %s7, %s8, %s9
  %s11 = sld [smem:[#allocation0]]
  $region54: #{tpu_custom_call.1} parent=0
    _
  %s13 = ssub.s32 1, %s11
  %s14 = scalar_select 0, %s13, %s11
  %15 = sst [smem:[#allocation2]] %s0
  $region1: #{tpu_custom_call.1} parent=0
    #allocation3 [shape = 'u8[4096]{0}', space=vmem, size = 0x1000, scoped, tag = 'output window, operand 0, single buffered']
    #allocation4 [shape = 's32[1]{0}', space=sflag, size = 0x4, scoped, tag = 'scoped memory for tpu_custom_call.1']
    #allocation5 [shape = 'u8[4096]{0}', space=vmem, size = 0x1000, scoped, tag = 'output window, operand 1, single buffered']
    #allocation6 [shape = 's32[1]{0}', space=sflag, size = 0x4, scoped, tag = 'scoped memory for tpu_custom_call.1']
    %16 = vsyncpa [#allocation4], 0
    %17 = vsyncpa [#allocation6], 0
    // Predicated region
    $region2: #{tpu_custom_call.1} parent=1 // pred_check
      _
    $region3: #{tpu_custom_call.1} parent=1 // pred_check_branch
      %19 = sbr.rel (0) target = $region5
    $region4: #{tpu_custom_call.1} parent=1 // pred_region
      _
    $region5: #{tpu_custom_call.1} parent=1 // pred_fallthru
      _
    // Predicated region
    $region6: #{tpu_custom_call.1} parent=1 // pred_check
      _
    $region7: #{tpu_custom_call.1} parent=1 // pred_check_branch
      %21 = sbr.rel (0) target = $region9
    $region8: #{tpu_custom_call.1} parent=1 // pred_region
      _
    $region9: #{tpu_custom_call.1} parent=1 // pred_fallthru
      _
    // Predicated region
    $region10: #{tpu_custom_call.1} parent=1 // pred_check
      _
    $region11: #{tpu_custom_call.1} parent=1 // pred_check_branch
      %23 = sbr.rel (0) target = $region13
    $region12: #{tpu_custom_call.1} parent=1 // pred_region
      _
    $region13: #{tpu_custom_call.1} parent=1 // pred_fallthru
      _
    // Predicated region
    $region14: #{tpu_custom_call.1} parent=1 // pred_check
      _
    $region15: #{tpu_custom_call.1} parent=1 // pred_check_branch
      %25 = sbr.rel (0) target = $region17
    $region16: #{tpu_custom_call.1} parent=1 // pred_region
      _
    $region17: #{tpu_custom_call.1} parent=1 // pred_fallthru
      _
    // Predicated region
    $region18: #{tpu_custom_call.1} parent=1 // pred_check
      _
    $region19: #{tpu_custom_call.1} parent=1 // pred_check_branch
      %27 = sbr.rel (0) target = $region21
    $region20: #{tpu_custom_call.1} parent=1 // pred_region
      _
    $region21: #{tpu_custom_call.1} parent=1 // pred_fallthru
      _
    // Predicated region
    $region22: #{tpu_custom_call.1} parent=1 // pred_check
      _
    $region23: #{tpu_custom_call.1} parent=1 // pred_check_branch
      %29 = sbr.rel (0) target = $region25
    $region24: #{tpu_custom_call.1} parent=1 // pred_region
      _
    $region25: #{tpu_custom_call.1} parent=1 // pred_fallthru
      _
    // Predicated region
    $region26: #{tpu_custom_call.1} parent=1 // pred_check
      _
    $region27: #{tpu_custom_call.1} parent=1 // pred_check_branch
      %31 = sbr.rel (0) target = $region29
    $region28: #{tpu_custom_call.1} parent=1 // pred_region
      _
    $region29: #{tpu_custom_call.1} parent=1 // pred_fallthru
      _
    %s32 = sld [smem:[#allocation2]]
    %v33 = vld [vmem:[%s1] sm:$0xff]
    %v34 = vld [vmem:[%s2] sm:$0xff]
    %v35 = vld [vmem:[%s3] sm:$0x1]
    %v37 = vlaneseq
    %v38 = vshrl.u32 %v37, 7
    %v39 = vsub.s32 0, %v38
    %v40 = vrot.slane %v35, %v39
    %vm42 = vcmask 64512
    %v44 = vsel %vm42, %v33, 0
    %46 = vmatprep.subr.mxu0 0.0
    %47 = vmatpush1.msra.mxu0 %v34
    %48 = vmatprep.subr.mxu0 0.0
    %49 = vmatpush1.msra.mxu0 0.0
    %50 = vmatprep.subr.mxu0 0.0
    %51 = vmatpush1.msra.mxu0 0.0
    %52 = vmatprep.subr.mxu0 0.0
    %53 = vmatpush1.msra.mxu0 0.0
    %54 = vmatprep.subr.mxu0 0.0
    %55 = vmatpush1.msra.mxu0 0.0
    %56 = vmatprep.subr.mxu0 0.0
    %57 = vmatpush1.msra.mxu0 0.0
    %58 = vmatprep.subr.mxu0 0.0
    %59 = vmatpush1.msra.mxu0 0.0
    %60 = vmatprep.subr.mxu0 0.0
    %61 = vmatpush1.msra.mxu0 0.0
    %62 = vmatprep.subr.mxu0 0.0
    %63 = vmatpush1.msra.mxu0 0.0
    %64 = vmatprep.subr.mxu0 0.0
    %65 = vmatpush1.msra.mxu0 0.0
    %66 = vmatprep.subr.mxu0 0.0
    %67 = vmatpush1.msra.mxu0 0.0
    %68 = vmatprep.subr.mxu0 0.0
    %69 = vmatpush1.msra.mxu0 0.0
    %70 = vmatprep.subr.mxu0 0.0
    %71 = vmatpush1.msra.mxu0 0.0
    %72 = vmatprep.subr.mxu0 0.0
    %73 = vmatpush1.msra.mxu0 0.0
    %74 = vmatprep.subr.mxu0 0.0
    %75 = vmatpush1.msra.mxu0 0.0
    %76 = vmatprep.subr.mxu0 0.0
    %77 = vmatpush1.msra.mxu0 0.0
    %78 = vmatprep.subr.mxu0 0.0
    %79 = vmatpush1.msra.mxu0 0.0
    %80 = vmatprep.subr.mxu0 0.0
    %81 = vmatpush1.msra.mxu0 0.0
    %82 = vmatprep.subr.mxu0 0.0
    %83 = vmatpush1.msra.mxu0 0.0
    %84 = vmatprep.subr.mxu0 0.0
    %85 = vmatpush1.msra.mxu0 0.0
    %86 = vmatprep.subr.mxu0 0.0
    %87 = vmatpush1.msra.mxu0 0.0
    %88 = vmatprep.subr.mxu0 0.0
    %89 = vmatpush1.msra.mxu0 0.0
    %90 = vmatprep.subr.mxu0 0.0
    %91 = vmatpush1.msra.mxu0 0.0
    %92 = vmatprep.subr.mxu0 0.0
    %93 = vmatpush1.msra.mxu0 0.0
    %94 = vmatprep.subr.mxu0 0.0
    %95 = vmatpush1.msra.mxu0 0.0
    %96 = vmatprep.subr.mxu0 0.0
    %97 = vmatpush1.msra.mxu0 0.0
    %98 = vmatprep.subr.mxu0 0.0
    %99 = vmatpush1.msra.mxu0 0.0
    %100 = vmatprep.subr.mxu0 0.0
    %101 = vmatpush1.msra.mxu0 0.0
    %102 = vmatprep.subr.mxu0 0.0
    %103 = vmatpush1.msra.mxu0 0.0
    %104 = vmatprep.subr.mxu0 0.0
    %105 = vmatpush1.msra.mxu0 0.0
    %106 = vmatprep.subr.mxu0 0.0
    %107 = vmatpush1.msra.mxu0 0.0
    %108 = vmatprep.subr.mxu0 0.0
    %109 = vmatpush1.msra.mxu0 0.0
    %110 = vmatprep.mubr.f32.mxu0 0.0
    %111 = vmatmul.mubr.f32.gmra.mrb[0].mxu0 %v44
    %v112 = vpop.f32.mrb[0].mxu0
    %v113 = vadd.f32 %v40, %v112
    %v114 = vpop.f32.mrb[0].mxu0
    %115 = vdwg.mxu0
    %v116 = vmax.f32 %v113, 0.0
    %v117 = vld [vmem:[%s4] sm:$0xff]
    %v118 = vld [vmem:[%s4 + $0x8] sm:$0xff]
    %v119 = vld [vmem:[%s4 + $0x10] sm:$0xff]
    %v120 = vld [vmem:[%s4 + $0x18] sm:$0xff]
    %v121 = vld [vmem:[%s5] sm:$0x1]
    %v123 = vlaneseq
    %v124 = vshrl.u32 %v123, 7
    %v125 = vsub.s32 0, %v124
    %v126 = vrot.slane %v121, %v125
    %vm128 = vcmask 261120
    %v130 = vsel %vm128, %v116, 0
    %132 = vmatprep.subr.mxu0 0.0
    %133 = vmatpush1.msra.mxu0 %v117
    %134 = vmatprep.subr.mxu0 0.0
    %135 = vmatpush1.msra.mxu0 %v118
    %136 = vmatprep.subr.mxu0 0.0
    %137 = vmatpush1.msra.mxu0 %v119
    %138 = vmatprep.subr.mxu0 0.0
    %139 = vmatpush1.msra.mxu0 %v120
    %140 = vmatprep.subr.mxu0 0.0
    %141 = vmatpush1.msra.mxu0 0.0
    %142 = vmatprep.subr.mxu0 0.0
    %143 = vmatpush1.msra.mxu0 0.0
    %144 = vmatprep.subr.mxu0 0.0
    %145 = vmatpush1.msra.mxu0 0.0
    %146 = vmatprep.subr.mxu0 0.0
    %147 = vmatpush1.msra.mxu0 0.0
    %148 = vmatprep.subr.mxu0 0.0
    %149 = vmatpush1.msra.mxu0 0.0
    %150 = vmatprep.subr.mxu0 0.0
    %151 = vmatpush1.msra.mxu0 0.0
    %152 = vmatprep.subr.mxu0 0.0
    %153 = vmatpush1.msra.mxu0 0.0
    %154 = vmatprep.subr.mxu0 0.0
    %155 = vmatpush1.msra.mxu0 0.0
    %156 = vmatprep.subr.mxu0 0.0
    %157 = vmatpush1.msra.mxu0 0.0
    %158 = vmatprep.subr.mxu0 0.0
    %159 = vmatpush1.msra.mxu0 0.0
    %160 = vmatprep.subr.mxu0 0.0
    %161 = vmatpush1.msra.mxu0 0.0
    %162 = vmatprep.subr.mxu0 0.0
    %163 = vmatpush1.msra.mxu0 0.0
    %164 = vmatprep.subr.mxu0 0.0
    %165 = vmatpush1.msra.mxu0 0.0
    %166 = vmatprep.subr.mxu0 0.0
    %167 = vmatpush1.msra.mxu0 0.0
    %168 = vmatprep.subr.mxu0 0.0
    %169 = vmatpush1.msra.mxu0 0.0
    %170 = vmatprep.subr.mxu0 0.0
    %171 = vmatpush1.msra.mxu0 0.0
    %172 = vmatprep.subr.mxu0 0.0
    %173 = vmatpush1.msra.mxu0 0.0
    %174 = vmatprep.subr.mxu0 0.0
    %175 = vmatpush1.msra.mxu0 0.0
    %176 = vmatprep.subr.mxu0 0.0
    %177 = vmatpush1.msra.mxu0 0.0
    %178 = vmatprep.subr.mxu0 0.0
    %179 = vmatpush1.msra.mxu0 0.0
    %180 = vmatprep.subr.mxu0 0.0
    %181 = vmatpush1.msra.mxu0 0.0
    %182 = vmatprep.subr.mxu0 0.0
    %183 = vmatpush1.msra.mxu0 0.0
    %184 = vmatprep.subr.mxu0 0.0
    %185 = vmatpush1.msra.mxu0 0.0
    %186 = vmatprep.subr.mxu0 0.0
    %187 = vmatpush1.msra.mxu0 0.0
    %188 = vmatprep.subr.mxu0 0.0
    %189 = vmatpush1.msra.mxu0 0.0
    %190 = vmatprep.subr.mxu0 0.0
    %191 = vmatpush1.msra.mxu0 0.0
    %192 = vmatprep.subr.mxu0 0.0
    %193 = vmatpush1.msra.mxu0 0.0
    %194 = vmatprep.subr.mxu0 0.0
    %195 = vmatpush1.msra.mxu0 0.0
    %196 = vmatprep.mubr.f32.mxu0 0.0
    %197 = vmatmul.mubr.f32.gmra.mrb[0].mxu0 %v130
    %v198 = vpop.f32.mrb[0].mxu0
    %v199 = vadd.f32 %v126, %v198
    %v200 = vpop.f32.mrb[0].mxu0
    %201 = vdwg.mxu0
    %v202 = vstv %s32
    %v203 = vmul.f32 %v199, %v202
    %vm204 = vcmask 39936
    %v205 = vsel %vm204, %v203, -inf
    %206 = vmax.xlane.f32.xlu0 %v205
    %v207 = vpop.xlane.xlu0 %206
    %v208 = vsub.f32 %v203, %v207
    %v209 = vmul.f32 %v208, 1.442695
    %v210 = vpow.pop %v209
    %v211 = vsel %vm204, %v210, 0.0
    %212 = vadd.xlane.f32.xlu0 %v211
    %v213 = vpop.xlane.xlu0 %212
    %v214 = vrcp.pop %v213
    %v215 = vmul.f32 %v210, %v214
    %v216 = vlog2.pop %v213
    %v217 = vmul.f32 %v216, 0.6931472
    %v218 = vsub.f32 %v208, %v217
    %219 = vst.msk [vmem:[#allocation3] sm:$0xff] %vm204, %v218
    %220 = vst.msk [vmem:[#allocation5] sm:$0xff] %vm204, %v215
    %v221 = vld [vmem:[%s6] sm:$0x1]
    %v223 = vlaneseq
    %v224 = vshrl.u32 %v223, 7
    %v225 = vsub.s32 0, %v224
    %v226 = vrot.slane %v221, %v225
    %v228 = vmul.f32 %v215, %v226
    %v229 = vsel %vm204, %v228, 0.0
    %230 = vadd.xlane.f32.xlu0 %v229
    %v231 = vpop.xlane.xlu0 %230
    %vm232 = vcmask 7168
    %233 = vst.msk [vmem:[%s9] sm:$0xff] %vm232, %v231
    // Predicated region
    $region30: #{tpu_custom_call.1} parent=1 // pred_check
      _
    $region31: #{tpu_custom_call.1} parent=1 // pred_check_branch
      %235 = sbr.rel (0) target = $region33
    $region32: #{tpu_custom_call.1} parent=1 // pred_region
      %s237 = ssub.s32 128, 128
      %238 = vsyncadd [#allocation4], %s237
      %s240 = sshll.u32 [#allocation3], 4
      %s241 = int_to_ptr.vmem [resolvable:$true] %s240
      %243 = dma.vmem_to_hbm [thread:$0]  %s241, 128, %s7, [#allocation4]
    $region33: #{tpu_custom_call.1} parent=1 // pred_fallthru
      _
    // Predicated region
    $region34: #{tpu_custom_call.1} parent=1 // pred_check
      _
    $region35: #{tpu_custom_call.1} parent=1 // pred_check_branch
      %245 = sbr.rel (0) target = $region37
    $region36: #{tpu_custom_call.1} parent=1 // pred_region
      %s247 = ssub.s32 128, 128
      %248 = vsyncadd [#allocation6], %s247
      %s250 = sshll.u32 [#allocation5], 4
      %s251 = int_to_ptr.vmem [resolvable:$true] %s250
      %253 = dma.vmem_to_hbm [thread:$0]  %s251, 128, %s8, [#allocation6]
    $region37: #{tpu_custom_call.1} parent=1 // pred_fallthru
      _
    // Predicated region
    $region38: #{tpu_custom_call.1} parent=1 // pred_check
      _
    $region39: #{tpu_custom_call.1} parent=1 // pred_check_branch
      %255 = sbr.rel (0) target = $region41
    $region40: #{tpu_custom_call.1} parent=1 // pred_region
      _
    $region41: #{tpu_custom_call.1} parent=1 // pred_fallthru
      _
    // Predicated region
    $region42: #{tpu_custom_call.1} parent=1 // pred_check
      _
    $region43: #{tpu_custom_call.1} parent=1 // pred_check_branch
      %257 = sbr.rel (0) target = $region45
    $region44: #{tpu_custom_call.1} parent=1 // pred_region
      %258 = dma.done [#allocation4], 128
    $region45: #{tpu_custom_call.1} parent=1 // pred_fallthru
      _
    // Predicated region
    $region46: #{tpu_custom_call.1} parent=1 // pred_check
      _
    $region47: #{tpu_custom_call.1} parent=1 // pred_check_branch
      %260 = sbr.rel (0) target = $region49
    $region48: #{tpu_custom_call.1} parent=1 // pred_region
      %261 = dma.done [#allocation6], 128
    $region49: #{tpu_custom_call.1} parent=1 // pred_fallthru
      _
    // Predicated region
    $region50: #{tpu_custom_call.1} parent=1 // pred_check
      _
    $region51: #{tpu_custom_call.1} parent=1 // pred_check_branch
      %263 = sbr.rel (0) target = $region53
    $region52: #{tpu_custom_call.1} parent=1 // pred_region
      _
    $region53: #{tpu_custom_call.1} parent=1 // pred_fallthru
      _
    %264 = vsyncpa [#allocation4], 1
    %265 = vsyncpa [#allocation6], 1

</llo_original>
